<compile_context>
chip_gen: v6e
topology: v6e:2x2x1
jax: 0.10.0
libtpu: 0.0.40
codegen_flags: <defaults>
</compile_context>

<pallas_src>
import functools

import jax
import jax.numpy as jnp
from jax.experimental import pallas as pl
from jax.experimental.pallas import tpu as pltpu


# ----------------------------- Pallas kernel --------------------------------

def _shared_rnn_kernel(x_ref, h_ref, w_ref, p_ref, out_ref, *, D, H, O_pad, row_off):
    """x:(AB,D) h:(AB,H) w:(rows,lane) bf16 weight slab, p:(8,lane) f32 bias/LN slab."""
    eps = 1e-5  # PyTorch nn.LayerNorm default
    off_pre, off_gx, off_gh, off_w2, off_out = row_off

    def ln_onepass(v):
        # mean and mean-of-squares are independent reductions (shorter XLU chain).
        mu = jnp.mean(v, axis=-1, keepdims=True)
        ms = jnp.mean(v * v, axis=-1, keepdims=True)
        var = jnp.maximum(ms - mu * mu, 0.0)
        return (v - mu) * jax.lax.rsqrt(var + eps)

    def ln_twopass(v):
        # Used only on raw inputs (avoids E[x^2]-E[x]^2 cancellation for large means).
        mu = jnp.mean(v, axis=-1, keepdims=True)
        c = v - mu
        var = jnp.mean(c * c, axis=-1, keepdims=True)
        return c * jax.lax.rsqrt(var + eps)

    x = x_ref[...].astype(jnp.float32)   # (AB, D)
    h = h_ref[...].astype(jnp.float32)   # (AB, H)

    # --- RNNBase.norm : LayerNorm(input_dim); affine (g0,b0) folded into w_pre/b_pre ---
    x = ln_twopass(x)

    # --- pre_rnn : Linear -> LayerNorm -> ReLU ---
    x = jnp.dot(x.astype(jnp.bfloat16), w_ref[off_pre:off_pre + D, 0:H],
                preferred_element_type=jnp.float32) + p_ref[0:1, 0:H]
    x = ln_onepass(x) * p_ref[1:2, 0:H] + p_ref[2:3, 0:H]
    x = jnp.maximum(x, 0.0)

    # --- GRUCell : lane-dense 4H gate layout  [r | z | n_ih | n_hh], r/z biases pre-summed.
    #     gates = x @ Wgx + h @ Wgh + b   (two dots instead of a lane-concat of [x|h]).
    gates = (jnp.dot(x.astype(jnp.bfloat16), w_ref[off_gx:off_gx + H, 0:4 * H],
                     preferred_element_type=jnp.float32)
             + jnp.dot(h.astype(jnp.bfloat16), w_ref[off_gh:off_gh + H, 0:4 * H],
                       preferred_element_type=jnp.float32)
             + p_ref[3:4, 0:4 * H])
    r = jax.nn.sigmoid(gates[:, 0 * H:1 * H])
    z = jax.nn.sigmoid(gates[:, 1 * H:2 * H])
    n = jnp.tanh(gates[:, 2 * H:3 * H] + r * gates[:, 3 * H:4 * H])
    h_new = (1.0 - z) * n + z * h

    # --- GRULayer.norm ; affine (g_gru, b_gru_norm) folded into w2/b2 ---
    h_new = ln_onepass(h_new)

    # --- post_rnn[0] : Linear -> LayerNorm -> ReLU ---
    y = jnp.dot(h_new.astype(jnp.bfloat16), w_ref[off_w2:off_w2 + H, 0:H],
                preferred_element_type=jnp.float32) + p_ref[4:5, 0:H]
    y = ln_onepass(y) * p_ref[5:6, 0:H] + p_ref[6:7, 0:H]
    y = jnp.maximum(y, 0.0)

    # --- post_rnn[-1] : plain Linear, lane-dense padded to O_pad (unmasked vst) ---
    out = jnp.dot(y.astype(jnp.bfloat16), w_ref[off_out:off_out + H, 0:O_pad],
                  preferred_element_type=jnp.float32) + p_ref[7:8, 0:O_pad]
    out_ref[...] = out.astype(out_ref.dtype)


# ------------------------------ JAX wrapper ----------------------------------

def multi_agent_shared_forward(inputs, hiddens, packed):
    """inputs: (A, B, D); hiddens: (A, B, H). Returns (outs (A, B, O), hiddens)."""
    A, B, D = inputs.shape
    H = hiddens.shape[-1]
    O = packed["output_dim"]
    O_pad = packed["o_pad"]
    AB = A * B

    # Shared weights -> fold agents into the batch; whole forward in one invocation.
    x2d = inputs.reshape(AB, D)
    h2d = hiddens.reshape(AB, H)

    kernel = functools.partial(_shared_rnn_kernel, D=D, H=H, O_pad=O_pad,
                               row_off=packed["row_off"])

    vmem = pl.BlockSpec(memory_space=pltpu.MemorySpace.VMEM)
    out2d = pl.pallas_call(
        kernel,
        out_shape=jax.ShapeDtypeStruct((AB, O_pad), jnp.float32),
        in_specs=[vmem, vmem, vmem, vmem],
        out_specs=vmem,
    )(x2d, h2d, packed["w_slab"], packed["p_slab"])

    outs = out2d[:, :O].reshape(A, B, O)
    # Matches PyTorch: the recurrent branch returns the *input* hiddens unchanged.
    return outs, hiddens


# --------------------------- deterministic params -----------------------------

def init_params(key, input_dim, hidden_dim, output_dim):
    """Deterministic synthetic init (orthogonal gain sqrt(2) for FC, uniform for GRU)."""
    ks = jax.random.split(key, 8)
    ortho = jax.nn.initializers.orthogonal(scale=jnp.sqrt(2.0))

    def linear(k, din, dout):
        # PyTorch weight is (dout, din); we store its transpose (din, dout).
        w = ortho(k, (dout, din), jnp.float32).T
        b = jnp.zeros((1, dout), jnp.float32)
        return w, b

    w_pre, b_pre = linear(ks[0], input_dim, hidden_dim)
    w2, b2 = linear(ks[1], hidden_dim, hidden_dim)
    w_out, b_out = linear(ks[2], hidden_dim, output_dim)

    # GRUCell default PyTorch init: U(-1/sqrt(H), 1/sqrt(H)); stored transposed (in, 3H).
    bound = 1.0 / jnp.sqrt(jnp.float32(hidden_dim))
    w_ih = jax.random.uniform(ks[3], (hidden_dim, 3 * hidden_dim), jnp.float32, -bound, bound)
    w_hh = jax.random.uniform(ks[4], (hidden_dim, 3 * hidden_dim), jnp.float32, -bound, bound)
    b_ih = jax.random.uniform(ks[5], (1, 3 * hidden_dim), jnp.float32, -bound, bound)
    b_hh = jax.random.uniform(ks[6], (1, 3 * hidden_dim), jnp.float32, -bound, bound)

    ones = lambda d: jnp.ones((1, d), jnp.float32)
    zeros = lambda d: jnp.zeros((1, d), jnp.float32)

    return {
        "g0": ones(input_dim), "b0": zeros(input_dim),
        "w_pre": w_pre, "b_pre": b_pre, "g1": ones(hidden_dim), "be1": zeros(hidden_dim),
        "w_ih": w_ih, "w_hh": w_hh, "b_ih": b_ih, "b_hh": b_hh,
        "g_gru": ones(hidden_dim), "b_gru": zeros(hidden_dim),
        "w2": w2, "b2": b2, "g2": ones(hidden_dim), "be2": zeros(hidden_dim),
        "w_out": w_out, "b_out": b_out,
    }


def pack_params(params, output_dim):
    """Fold LN affines into adjacent Linears, build the lane-dense GRU gate weights,
    and pack everything into one bf16 weight slab + one (8,128) f32 bias/LN slab."""
    D = params["w_pre"].shape[0]
    H = params["w_hh"].shape[0]
    O = output_dim
    O_pad = ((O + 127) // 128) * 128
    lane = ((max(128, 4 * H, O_pad) + 127) // 128) * 128
    rup16 = lambda n: ((n + 15) // 16) * 16

    # --- fold LN affines with no intervening nonlinearity into the next Linear ---
    w_pre = params["w_pre"] * params["g0"].reshape(D, 1)
    b_pre = params["b0"] @ params["w_pre"] + params["b_pre"]
    w2 = params["w2"] * params["g_gru"].reshape(H, 1)
    b2 = params["b_gru"] @ params["w2"] + params["b2"]

    # --- GRU weights, lane-dense 4H layout: [r(ih) | z(ih) | n(ih) | 0] and
    #                                        [r(hh) | z(hh) | 0     | n(hh)] ---
    w_ih, w_hh = params["w_ih"], params["w_hh"]          # (D_in, 3H), (H, 3H)
    w_gx = jnp.zeros((H, 4 * H), jnp.float32).at[:, 0:3 * H].set(w_ih)
    w_gh = jnp.zeros((H, 4 * H), jnp.float32)
    w_gh = w_gh.at[:, 0:2 * H].set(w_hh[:, 0:2 * H])
    w_gh = w_gh.at[:, 3 * H:4 * H].set(w_hh[:, 2 * H:3 * H])
    b_ih, b_hh = params["b_ih"], params["b_hh"]          # (1, 3H)
    b_gates = jnp.zeros((1, 4 * H), jnp.float32)
    b_gates = b_gates.at[:, 0:2 * H].set(b_ih[:, 0:2 * H] + b_hh[:, 0:2 * H])
    b_gates = b_gates.at[:, 2 * H:3 * H].set(b_ih[:, 2 * H:3 * H])
    b_gates = b_gates.at[:, 3 * H:4 * H].set(b_hh[:, 2 * H:3 * H])

    # --- output projection, zero-padded to a lane-dense 128-multiple width ---
    w_out = jnp.zeros((H, O_pad), jnp.float32).at[:, :O].set(params["w_out"])
    b_out = jnp.zeros((1, O_pad), jnp.float32).at[:, :O].set(params["b_out"])

    # --- bf16 weight slab: row-stacked blocks, each row offset a multiple of 16 ---
    off_pre = 0
    off_gx = off_pre + rup16(D)
    off_gh = off_gx + rup16(H)
    off_w2 = off_gh + rup16(H)
    off_out = off_w2 + rup16(H)
    total = off_out + rup16(H)
    w_slab = jnp.zeros((total, lane), jnp.float32)
    w_slab = w_slab.at[off_pre:off_pre + D, 0:H].set(w_pre)
    w_slab = w_slab.at[off_gx:off_gx + H, 0:4 * H].set(w_gx)
    w_slab = w_slab.at[off_gh:off_gh + H, 0:4 * H].set(w_gh)
    w_slab = w_slab.at[off_w2:off_w2 + H, 0:H].set(w2)
    w_slab = w_slab.at[off_out:off_out + H, 0:O_pad].set(w_out)
    w_slab = w_slab.astype(jnp.bfloat16)

    # --- f32 param slab: one 128-lane row per bias / remaining LN affine ---
    p_slab = jnp.zeros((8, lane), jnp.float32)
    p_slab = p_slab.at[0, 0:H].set(b_pre[0])              # pre_rnn bias (b0 folded in)
    p_slab = p_slab.at[1, 0:H].set(params["g1"][0])       # pre_rnn LN gamma
    p_slab = p_slab.at[2, 0:H].set(params["be1"][0])      # pre_rnn LN beta
    p_slab = p_slab.at[3, 0:4 * H].set(b_gates[0])        # fused GRU gate bias
    p_slab = p_slab.at[4, 0:H].set(b2[0])                 # post_rnn[0] bias (b_gru folded in)
    p_slab = p_slab.at[5, 0:H].set(params["g2"][0])       # post_rnn[0] LN gamma
    p_slab = p_slab.at[6, 0:H].set(params["be2"][0])      # post_rnn[0] LN beta
    p_slab = p_slab.at[7, 0:O_pad].set(b_out[0])          # output bias (lane-padded)

    return {"w_slab": w_slab, "p_slab": p_slab,
            "row_off": (off_pre, off_gx, off_gh, off_w2, off_out),
            "output_dim": O, "o_pad": O_pad}


# --------------------------- pure-JAX reference --------------------------------

def reference_forward(inputs, hiddens, params):
    """Unfused f32 reference (mirrors the PyTorch RNNBase forward)."""
    eps = 1e-5
    H = hiddens.shape[-1]

    def ln(v, g, b):
        mu = jnp.mean(v, -1, keepdims=True)
        var = jnp.mean((v - mu) ** 2, -1, keepdims=True)
        return (v - mu) / jnp.sqrt(var + eps) * g + b

    x = ln(inputs, params["g0"], params["b0"])
    x = jnp.maximum(ln(x @ params["w_pre"] + params["b_pre"], params["g1"], params["be1"]), 0.0)
    gi = x @ params["w_ih"] + params["b_ih"]
    gh = hiddens @ params["w_hh"] + params["b_hh"]
    r = jax.nn.sigmoid(gi[..., 0:H] + gh[..., 0:H])
    z = jax.nn.sigmoid(gi[..., H:2 * H] + gh[..., H:2 * H])
    n = jnp.tanh(gi[..., 2 * H:3 * H] + r * gh[..., 2 * H:3 * H])
    h_new = (1.0 - z) * n + z * hiddens
    h_new = ln(h_new, params["g_gru"], params["b_gru"])
    y = jnp.maximum(ln(h_new @ params["w2"] + params["b2"], params["g2"], params["be2"]), 0.0)
    return y @ params["w_out"] + params["b_out"]


# ----------------------------------- main -------------------------------------

if __name__ == "__main__":
    n_agents, batch = 3, 8
    input_dim, hidden_dim, output_dim = 16, 32, 8   # hidden_dims = [32, 32]

    key = jax.random.PRNGKey(0)
    k_in, k_h, k_w = jax.random.split(key, 3)

    inputs = jax.random.normal(k_in, (n_agents, batch, input_dim), jnp.float32)
    hiddens = jax.random.normal(k_h, (n_agents, batch, hidden_dim), jnp.float32)
    params = init_params(k_w, input_dim, hidden_dim, output_dim)
    packed = pack_params(params, output_dim)

    fwd = jax.jit(functools.partial(multi_agent_shared_forward, packed=packed))
    outs, hiddens_out = fwd(inputs, hiddens)
    jax.block_until_ready(outs)
    jax.block_until_ready(hiddens_out)

    ref = reference_forward(inputs, hiddens, params)

    assert outs.shape == (n_agents, batch, output_dim)
    assert hiddens_out.shape == (n_agents, batch, hidden_dim)
    assert bool(jnp.all(jnp.isfinite(outs)))
    # bf16 MXU operands -> ~1e-2-level relative error vs. the f32 reference.
    max_err = float(jnp.max(jnp.abs(outs - ref)))
    assert bool(jnp.allclose(outs, ref, atol=1e-1, rtol=1e-1)), max_err
    print("KERNEL_OK")
</pallas_src>

<mosaic_0001>
module attributes {stable_mosaic.version = 11 : i64} {
  func.func @_shared_rnn_kernel(%arg0: memref<24x16xf32, #tpu.memory_space<vmem>>, %arg1: memref<24x32xf32, #tpu.memory_space<vmem>>, %arg2: memref<144x128xbf16, #tpu.memory_space<vmem>>, %arg3: memref<8x128xf32, #tpu.memory_space<vmem>>, %arg4: memref<24x128xf32, #tpu.memory_space<vmem>>) attributes {dimension_semantics = [], scalar_prefetch = 0 : i64, scratch_operands = 0 : i64, tpu.core_type = #tpu.core_type<tc>} {
    %c0 = arith.constant 0 : index
    %c0_0 = arith.constant 0 : index
    %0 = vector.load %arg0[%c0, %c0_0] : memref<24x16xf32, #tpu.memory_space<vmem>>, vector<24x16xf32>
    %c0_1 = arith.constant 0 : index
    %c0_2 = arith.constant 0 : index
    %1 = vector.load %arg1[%c0_1, %c0_2] : memref<24x32xf32, #tpu.memory_space<vmem>>, vector<24x32xf32>
    %cst = arith.constant dense<0.000000e+00> : vector<24xf32>
    %2 = vector.multi_reduction <add>, %0, %cst [1] : vector<24x16xf32> to vector<24xf32>
    %3 = vector.shape_cast %2 : vector<24xf32> to vector<24x1xf32>
    %cst_3 = arith.constant 1.600000e+01 : f32
    %4 = vector.broadcast %cst_3 : f32 to vector<24x1xf32>
    %5 = arith.divf %3, %4 : vector<24x1xf32>
    %6 = vector.broadcast %5 : vector<24x1xf32> to vector<24x16xf32>
    %7 = arith.subf %0, %6 : vector<24x16xf32>
    %8 = arith.mulf %7, %7 : vector<24x16xf32>
    %cst_4 = arith.constant dense<0.000000e+00> : vector<24xf32>
    %9 = vector.multi_reduction <add>, %8, %cst_4 [1] : vector<24x16xf32> to vector<24xf32>
    %10 = vector.shape_cast %9 : vector<24xf32> to vector<24x1xf32>
    %cst_5 = arith.constant 1.600000e+01 : f32
    %11 = vector.broadcast %cst_5 : f32 to vector<24x1xf32>
    %12 = arith.divf %10, %11 : vector<24x1xf32>
    %cst_6 = arith.constant 9.99999974E-6 : f32
    %13 = vector.broadcast %cst_6 : f32 to vector<24x1xf32>
    %14 = arith.addf %12, %13 : vector<24x1xf32>
    %15 = math.rsqrt %14 : vector<24x1xf32>
    %16 = vector.broadcast %15 : vector<24x1xf32> to vector<24x16xf32>
    %17 = arith.mulf %7, %16 : vector<24x16xf32>
    %18 = arith.truncf %17 : vector<24x16xf32> to vector<24x16xbf16>
    %c0_7 = arith.constant 0 : index
    %c0_8 = arith.constant 0 : index
    %19 = vector.load %arg2[%c0_7, %c0_8] : memref<144x128xbf16, #tpu.memory_space<vmem>>, vector<16x32xbf16>
    %cst_9 = arith.constant dense<0.000000e+00> : vector<24x32xf32>
    %20 = tpu.matmul %18, %19, %cst_9 {dimension_numbers = #tpu.dot_dimension_numbers<[1], [0], [0], [1], [0, 0, 1, 1], [], []>} : vector<24x16xbf16>, vector<16x32xbf16>, vector<24x32xf32> -> vector<24x32xf32>
    %c0_10 = arith.constant 0 : index
    %c0_11 = arith.constant 0 : index
    %21 = vector.load %arg3[%c0_10, %c0_11] : memref<8x128xf32, #tpu.memory_space<vmem>>, vector<1x32xf32>
    %22 = vector.broadcast %21 : vector<1x32xf32> to vector<24x32xf32>
    %23 = arith.addf %20, %22 : vector<24x32xf32>
    %cst_12 = arith.constant dense<0.000000e+00> : vector<24xf32>
    %24 = vector.multi_reduction <add>, %23, %cst_12 [1] : vector<24x32xf32> to vector<24xf32>
    %25 = vector.shape_cast %24 : vector<24xf32> to vector<24x1xf32>
    %cst_13 = arith.constant 3.200000e+01 : f32
    %26 = vector.broadcast %cst_13 : f32 to vector<24x1xf32>
    %27 = arith.divf %25, %26 : vector<24x1xf32>
    %28 = arith.mulf %23, %23 : vector<24x32xf32>
    %cst_14 = arith.constant dense<0.000000e+00> : vector<24xf32>
    %29 = vector.multi_reduction <add>, %28, %cst_14 [1] : vector<24x32xf32> to vector<24xf32>
    %30 = vector.shape_cast %29 : vector<24xf32> to vector<24x1xf32>
    %cst_15 = arith.constant 3.200000e+01 : f32
    %31 = vector.broadcast %cst_15 : f32 to vector<24x1xf32>
    %32 = arith.divf %30, %31 : vector<24x1xf32>
    %33 = arith.mulf %27, %27 : vector<24x1xf32>
    %34 = arith.subf %32, %33 : vector<24x1xf32>
    %cst_16 = arith.constant 0.000000e+00 : f32
    %35 = vector.broadcast %cst_16 : f32 to vector<24x1xf32>
    %36 = arith.maximumf %34, %35 : vector<24x1xf32>
    %37 = vector.broadcast %27 : vector<24x1xf32> to vector<24x32xf32>
    %38 = arith.subf %23, %37 : vector<24x32xf32>
    %cst_17 = arith.constant 9.99999974E-6 : f32
    %39 = vector.broadcast %cst_17 : f32 to vector<24x1xf32>
    %40 = arith.addf %36, %39 : vector<24x1xf32>
    %41 = math.rsqrt %40 : vector<24x1xf32>
    %42 = vector.broadcast %41 : vector<24x1xf32> to vector<24x32xf32>
    %43 = arith.mulf %38, %42 : vector<24x32xf32>
    %c1 = arith.constant 1 : index
    %c0_18 = arith.constant 0 : index
    %44 = vector.load %arg3[%c1, %c0_18] : memref<8x128xf32, #tpu.memory_space<vmem>>, vector<1x32xf32>
    %45 = vector.broadcast %44 : vector<1x32xf32> to vector<24x32xf32>
    %46 = arith.mulf %43, %45 : vector<24x32xf32>
    %c2 = arith.constant 2 : index
    %c0_19 = arith.constant 0 : index
    %47 = vector.load %arg3[%c2, %c0_19] : memref<8x128xf32, #tpu.memory_space<vmem>>, vector<1x32xf32>
    %48 = vector.broadcast %47 : vector<1x32xf32> to vector<24x32xf32>
    %49 = arith.addf %46, %48 : vector<24x32xf32>
    %cst_20 = arith.constant 0.000000e+00 : f32
    %50 = vector.broadcast %cst_20 : f32 to vector<24x32xf32>
    %51 = arith.maximumf %49, %50 : vector<24x32xf32>
    %52 = arith.truncf %51 : vector<24x32xf32> to vector<24x32xbf16>
    %c16 = arith.constant 16 : index
    %c0_21 = arith.constant 0 : index
    %53 = vector.load %arg2[%c16, %c0_21] : memref<144x128xbf16, #tpu.memory_space<vmem>>, vector<32x128xbf16>
    %cst_22 = arith.constant dense<0.000000e+00> : vector<24x128xf32>
    %54 = tpu.matmul %52, %53, %cst_22 {dimension_numbers = #tpu.dot_dimension_numbers<[1], [0], [0], [1], [0, 0, 1, 1], [], []>} : vector<24x32xbf16>, vector<32x128xbf16>, vector<24x128xf32> -> vector<24x128xf32>
    %55 = arith.truncf %1 : vector<24x32xf32> to vector<24x32xbf16>
    %c48 = arith.constant 48 : index
    %c0_23 = arith.constant 0 : index
    %56 = vector.load %arg2[%c48, %c0_23] : memref<144x128xbf16, #tpu.memory_space<vmem>>, vector<32x128xbf16>
    %cst_24 = arith.constant dense<0.000000e+00> : vector<24x128xf32>
    %57 = tpu.matmul %55, %56, %cst_24 {dimension_numbers = #tpu.dot_dimension_numbers<[1], [0], [0], [1], [0, 0, 1, 1], [], []>} : vector<24x32xbf16>, vector<32x128xbf16>, vector<24x128xf32> -> vector<24x128xf32>
    %58 = arith.addf %54, %57 : vector<24x128xf32>
    %c3 = arith.constant 3 : index
    %c0_25 = arith.constant 0 : index
    %59 = vector.load %arg3[%c3, %c0_25] : memref<8x128xf32, #tpu.memory_space<vmem>>, vector<1x128xf32>
    %60 = vector.broadcast %59 : vector<1x128xf32> to vector<24x128xf32>
    %61 = arith.addf %58, %60 : vector<24x128xf32>
    %62 = vector.extract_strided_slice %61 {offsets = [0, 0], sizes = [24, 32], strides = [1, 1]} : vector<24x128xf32> to vector<24x32xf32>
    %63 = arith.negf %62 : vector<24x32xf32>
    %64 = math.exp %63 : vector<24x32xf32>
    %cst_26 = arith.constant 1.000000e+00 : f32
    %65 = vector.broadcast %cst_26 : f32 to vector<24x32xf32>
    %66 = arith.addf %65, %64 : vector<24x32xf32>
    %67 = arith.divf %65, %66 : vector<24x32xf32>
    %68 = vector.extract_strided_slice %61 {offsets = [0, 32], sizes = [24, 32], strides = [1, 1]} : vector<24x128xf32> to vector<24x32xf32>
    %69 = arith.negf %68 : vector<24x32xf32>
    %70 = math.exp %69 : vector<24x32xf32>
    %cst_27 = arith.constant 1.000000e+00 : f32
    %71 = vector.broadcast %cst_27 : f32 to vector<24x32xf32>
    %72 = arith.addf %71, %70 : vector<24x32xf32>
    %73 = arith.divf %71, %72 : vector<24x32xf32>
    %74 = vector.extract_strided_slice %61 {offsets = [0, 64], sizes = [24, 32], strides = [1, 1]} : vector<24x128xf32> to vector<24x32xf32>
    %75 = vector.extract_strided_slice %61 {offsets = [0, 96], sizes = [24, 32], strides = [1, 1]} : vector<24x128xf32> to vector<24x32xf32>
    %76 = arith.mulf %67, %75 : vector<24x32xf32>
    %77 = arith.addf %74, %76 : vector<24x32xf32>
    %78 = math.tanh %77 : vector<24x32xf32>
    %cst_28 = arith.constant 1.000000e+00 : f32
    %79 = vector.broadcast %cst_28 : f32 to vector<24x32xf32>
    %80 = arith.subf %79, %73 : vector<24x32xf32>
    %81 = arith.mulf %80, %78 : vector<24x32xf32>
    %82 = arith.mulf %73, %1 : vector<24x32xf32>
    %83 = arith.addf %81, %82 : vector<24x32xf32>
    %cst_29 = arith.constant dense<0.000000e+00> : vector<24xf32>
    %84 = vector.multi_reduction <add>, %83, %cst_29 [1] : vector<24x32xf32> to vector<24xf32>
    %85 = vector.shape_cast %84 : vector<24xf32> to vector<24x1xf32>
    %cst_30 = arith.constant 3.200000e+01 : f32
    %86 = vector.broadcast %cst_30 : f32 to vector<24x1xf32>
    %87 = arith.divf %85, %86 : vector<24x1xf32>
    %88 = arith.mulf %83, %83 : vector<24x32xf32>
    %cst_31 = arith.constant dense<0.000000e+00> : vector<24xf32>
    %89 = vector.multi_reduction <add>, %88, %cst_31 [1] : vector<24x32xf32> to vector<24xf32>
    %90 = vector.shape_cast %89 : vector<24xf32> to vector<24x1xf32>
    %cst_32 = arith.constant 3.200000e+01 : f32
    %91 = vector.broadcast %cst_32 : f32 to vector<24x1xf32>
    %92 = arith.divf %90, %91 : vector<24x1xf32>
    %93 = arith.mulf %87, %87 : vector<24x1xf32>
    %94 = arith.subf %92, %93 : vector<24x1xf32>
    %cst_33 = arith.constant 0.000000e+00 : f32
    %95 = vector.broadcast %cst_33 : f32 to vector<24x1xf32>
    %96 = arith.maximumf %94, %95 : vector<24x1xf32>
    %97 = vector.broadcast %87 : vector<24x1xf32> to vector<24x32xf32>
    %98 = arith.subf %83, %97 : vector<24x32xf32>
    %cst_34 = arith.constant 9.99999974E-6 : f32
    %99 = vector.broadcast %cst_34 : f32 to vector<24x1xf32>
    %100 = arith.addf %96, %99 : vector<24x1xf32>
    %101 = math.rsqrt %100 : vector<24x1xf32>
    %102 = vector.broadcast %101 : vector<24x1xf32> to vector<24x32xf32>
    %103 = arith.mulf %98, %102 : vector<24x32xf32>
    %104 = arith.truncf %103 : vector<24x32xf32> to vector<24x32xbf16>
    %c80 = arith.constant 80 : index
    %c0_35 = arith.constant 0 : index
    %105 = vector.load %arg2[%c80, %c0_35] : memref<144x128xbf16, #tpu.memory_space<vmem>>, vector<32x32xbf16>
    %cst_36 = arith.constant dense<0.000000e+00> : vector<24x32xf32>
    %106 = tpu.matmul %104, %105, %cst_36 {dimension_numbers = #tpu.dot_dimension_numbers<[1], [0], [0], [1], [0, 0, 1, 1], [], []>} : vector<24x32xbf16>, vector<32x32xbf16>, vector<24x32xf32> -> vector<24x32xf32>
    %c4 = arith.constant 4 : index
    %c0_37 = arith.constant 0 : index
    %107 = vector.load %arg3[%c4, %c0_37] : memref<8x128xf32, #tpu.memory_space<vmem>>, vector<1x32xf32>
    %108 = vector.broadcast %107 : vector<1x32xf32> to vector<24x32xf32>
    %109 = arith.addf %106, %108 : vector<24x32xf32>
    %cst_38 = arith.constant dense<0.000000e+00> : vector<24xf32>
    %110 = vector.multi_reduction <add>, %109, %cst_38 [1] : vector<24x32xf32> to vector<24xf32>
    %111 = vector.shape_cast %110 : vector<24xf32> to vector<24x1xf32>
    %cst_39 = arith.constant 3.200000e+01 : f32
    %112 = vector.broadcast %cst_39 : f32 to vector<24x1xf32>
    %113 = arith.divf %111, %112 : vector<24x1xf32>
    %114 = arith.mulf %109, %109 : vector<24x32xf32>
    %cst_40 = arith.constant dense<0.000000e+00> : vector<24xf32>
    %115 = vector.multi_reduction <add>, %114, %cst_40 [1] : vector<24x32xf32> to vector<24xf32>
    %116 = vector.shape_cast %115 : vector<24xf32> to vector<24x1xf32>
    %cst_41 = arith.constant 3.200000e+01 : f32
    %117 = vector.broadcast %cst_41 : f32 to vector<24x1xf32>
    %118 = arith.divf %116, %117 : vector<24x1xf32>
    %119 = arith.mulf %113, %113 : vector<24x1xf32>
    %120 = arith.subf %118, %119 : vector<24x1xf32>
    %cst_42 = arith.constant 0.000000e+00 : f32
    %121 = vector.broadcast %cst_42 : f32 to vector<24x1xf32>
    %122 = arith.maximumf %120, %121 : vector<24x1xf32>
    %123 = vector.broadcast %113 : vector<24x1xf32> to vector<24x32xf32>
    %124 = arith.subf %109, %123 : vector<24x32xf32>
    %cst_43 = arith.constant 9.99999974E-6 : f32
    %125 = vector.broadcast %cst_43 : f32 to vector<24x1xf32>
    %126 = arith.addf %122, %125 : vector<24x1xf32>
    %127 = math.rsqrt %126 : vector<24x1xf32>
    %128 = vector.broadcast %127 : vector<24x1xf32> to vector<24x32xf32>
    %129 = arith.mulf %124, %128 : vector<24x32xf32>
    %c5 = arith.constant 5 : index
    %c0_44 = arith.constant 0 : index
    %130 = vector.load %arg3[%c5, %c0_44] : memref<8x128xf32, #tpu.memory_space<vmem>>, vector<1x32xf32>
    %131 = vector.broadcast %130 : vector<1x32xf32> to vector<24x32xf32>
    %132 = arith.mulf %129, %131 : vector<24x32xf32>
    %c6 = arith.constant 6 : index
    %c0_45 = arith.constant 0 : index
    %133 = vector.load %arg3[%c6, %c0_45] : memref<8x128xf32, #tpu.memory_space<vmem>>, vector<1x32xf32>
    %134 = vector.broadcast %133 : vector<1x32xf32> to vector<24x32xf32>
    %135 = arith.addf %132, %134 : vector<24x32xf32>
    %cst_46 = arith.constant 0.000000e+00 : f32
    %136 = vector.broadcast %cst_46 : f32 to vector<24x32xf32>
    %137 = arith.maximumf %135, %136 : vector<24x32xf32>
    %138 = arith.truncf %137 : vector<24x32xf32> to vector<24x32xbf16>
    %c112 = arith.constant 112 : index
    %c0_47 = arith.constant 0 : index
    %139 = vector.load %arg2[%c112, %c0_47] : memref<144x128xbf16, #tpu.memory_space<vmem>>, vector<32x128xbf16>
    %cst_48 = arith.constant dense<0.000000e+00> : vector<24x128xf32>
    %140 = tpu.matmul %138, %139, %cst_48 {dimension_numbers = #tpu.dot_dimension_numbers<[1], [0], [0], [1], [0, 0, 1, 1], [], []>} : vector<24x32xbf16>, vector<32x128xbf16>, vector<24x128xf32> -> vector<24x128xf32>
    %c7 = arith.constant 7 : index
    %c0_49 = arith.constant 0 : index
    %141 = vector.load %arg3[%c7, %c0_49] : memref<8x128xf32, #tpu.memory_space<vmem>>, vector<1x128xf32>
    %142 = vector.broadcast %141 : vector<1x128xf32> to vector<24x128xf32>
    %143 = arith.addf %140, %142 : vector<24x128xf32>
    %c0_50 = arith.constant 0 : index
    %c0_51 = arith.constant 0 : index
    %144 = vector.load %arg4[%c0_50, %c0_51] : memref<24x128xf32, #tpu.memory_space<vmem>>, vector<24x128xf32>
    tpu.vector_store %arg4[%c0_50, %c0_51], %143 {strides = array<i32>} : memref<24x128xf32, #tpu.memory_space<vmem>>, vector<24x128xf32>,
    return
  }
}

</mosaic_0001>

<llo_original>
// kernel: multi_agent_shared_forward.1
$region0: #{multi_agent_shared_forward.1}
  #allocation0 [shape = 'u32[]', space=smem, size = 0x4, offset = 0x4, fixed_abs, tag = 'smem constant byte address 0x4 - core index']
  #allocation1 [shape = 'u32[144,128]{1,0:T(1,128)}', space=vmem, size = 0x12000, scoped, tag = 'internal scratch']
  %s0 = inlined_call_operand.hbm [shape: f32[24,16], index: 0, kind: input, shape index: {}]
  %s1 = inlined_call_operand.hbm [shape: f32[24,32], index: 1, kind: input, shape index: {}]
  %s2 = inlined_call_operand.hbm [shape: bf16[144,128], index: 2, kind: input, shape index: {}]
  %s3 = inlined_call_operand.vmem [shape: f32[8,128], index: 3, kind: input, shape index: {}]
  %s4 = inlined_call_operand.vmem [shape: f32[24,128], index: 4, kind: output, shape index: {}]
  %s5 = sld [smem:[#allocation0]]
  $region38: #{multi_agent_shared_forward.1} parent=0
    _
  %s7 = ssub.s32 1, %s5
  %s8 = scalar_select 0, %s7, %s5
  $region1: #{multi_agent_shared_forward.1} parent=0
    #allocation2 [shape = 'u8[12288]{0}', space=vmem, size = 0x3000, scoped, tag = 'input window, operand 0, single buffered']
    #allocation3 [shape = 's32[1]{0}', space=sflag, size = 0x4, scoped, tag = 'scoped memory for multi_agent_shared_forward.1']
    #allocation4 [shape = 'u8[12288]{0}', space=vmem, size = 0x3000, scoped, tag = 'input window, operand 1, single buffered']
    #allocation5 [shape = 's32[1]{0}', space=sflag, size = 0x4, scoped, tag = 'scoped memory for multi_agent_shared_forward.1']
    #allocation6 [shape = 'u8[36864]{0}', space=vmem, size = 0x9000, scoped, tag = 'input window, operand 2, single buffered']
    %9 = vsyncpa [#allocation3], 0
    %10 = vsyncpa [#allocation5], 0
    // Predicated region
    $region2: #{multi_agent_shared_forward.1} parent=1 // pred_check
      _
    $region3: #{multi_agent_shared_forward.1} parent=1 // pred_check_branch
      %12 = sbr.rel (0) target = $region5
    $region4: #{multi_agent_shared_forward.1} parent=1 // pred_region
      %s14 = ssub.s32 384, 384
      %15 = vsyncadd [#allocation3], %s14
      %s16 = sshll.u32 [#allocation2], 4
      %s17 = int_to_ptr.vmem [resolvable:$true] %s16
      %22 = dma.hbm_to_vmem [thread:$0]  %s0, 384, %s17, [#allocation3], 128, 128, 8
    $region5: #{multi_agent_shared_forward.1} parent=1 // pred_fallthru
      _
    // Predicated region
    $region6: #{multi_agent_shared_forward.1} parent=1 // pred_check
      _
    $region7: #{multi_agent_shared_forward.1} parent=1 // pred_check_branch
      %24 = sbr.rel (0) target = $region9
    $region8: #{multi_agent_shared_forward.1} parent=1 // pred_region
      %s26 = ssub.s32 384, 384
      %27 = vsyncadd [#allocation5], %s26
      %s28 = sshll.u32 [#allocation4], 4
      %s29 = int_to_ptr.vmem [resolvable:$true] %s28
      %34 = dma.hbm_to_vmem [thread:$0]  %s1, 384, %s29, [#allocation5], 128, 128, 8
    $region9: #{multi_agent_shared_forward.1} parent=1 // pred_fallthru
      _
    // Predicated region
    $region10: #{multi_agent_shared_forward.1} parent=1 // pred_check
      _
    $region11: #{multi_agent_shared_forward.1} parent=1 // pred_check_branch
      %36 = sbr.rel (0) target = $region13
    $region12: #{multi_agent_shared_forward.1} parent=1 // pred_region
      %s38 = ssub.s32 1152, 1152
      %39 = vsyncadd [#allocation5], %s38
      %s40 = sshll.u32 [#allocation6], 4
      %s41 = int_to_ptr.vmem [resolvable:$true] %s40
      %46 = dma.hbm_to_vmem [thread:$0]  %s2, 1152, %s41, [#allocation5], 64, 64, 4
    $region13: #{multi_agent_shared_forward.1} parent=1 // pred_fallthru
      _
    // Predicated region
    $region14: #{multi_agent_shared_forward.1} parent=1 // pred_check
      _
    $region15: #{multi_agent_shared_forward.1} parent=1 // pred_check_branch
      %48 = sbr.rel (0) target = $region17
    $region16: #{multi_agent_shared_forward.1} parent=1 // pred_region
      _
    $region17: #{multi_agent_shared_forward.1} parent=1 // pred_fallthru
      _
    // Predicated region
    $region18: #{multi_agent_shared_forward.1} parent=1 // pred_check
      _
    $region19: #{multi_agent_shared_forward.1} parent=1 // pred_check_branch
      %50 = sbr.rel (0) target = $region21
    $region20: #{multi_agent_shared_forward.1} parent=1 // pred_region
      %51 = dma.done [#allocation3], 384
    $region21: #{multi_agent_shared_forward.1} parent=1 // pred_fallthru
      _
    // Predicated region
    $region22: #{multi_agent_shared_forward.1} parent=1 // pred_check
      _
    $region23: #{multi_agent_shared_forward.1} parent=1 // pred_check_branch
      %53 = sbr.rel (0) target = $region25
    $region24: #{multi_agent_shared_forward.1} parent=1 // pred_region
      %54 = dma.done [#allocation5], 384
    $region25: #{multi_agent_shared_forward.1} parent=1 // pred_fallthru
      _
    // Predicated region
    $region26: #{multi_agent_shared_forward.1} parent=1 // pred_check
      _
    $region27: #{multi_agent_shared_forward.1} parent=1 // pred_check_branch
      %56 = sbr.rel (0) target = $region29
    $region28: #{multi_agent_shared_forward.1} parent=1 // pred_region
      %57 = dma.done [#allocation5], 1152
    $region29: #{multi_agent_shared_forward.1} parent=1 // pred_fallthru
      _
    %v59 = vld [vmem:[#allocation2] sm:$0xff]
    %v60 = vld [vmem:[#allocation2 + $0x8] sm:$0xff]
    %v61 = vld [vmem:[#allocation2 + $0x10] sm:$0xff]
    %v62 = vld [vmem:[#allocation4] sm:$0xff]
    %v63 = vld [vmem:[#allocation4 + $0x8] sm:$0xff]
    %v64 = vld [vmem:[#allocation4 + $0x10] sm:$0xff]
    %vm65 = vcmask 130048
    %v66 = vsel %vm65, %v59, 0.0
    %67 = vadd.xlane.f32.xlu0 %v66
    %v68 = vpop.xlane.xlu0 %67
    %v69 = vsel %vm65, %v60, 0.0
    %70 = vadd.xlane.f32.xlu0 %v69
    %v71 = vpop.xlane.xlu0 %70
    %v72 = vsel %vm65, %v61, 0.0
    %73 = vadd.xlane.f32.xlu0 %v72
    %v74 = vpop.xlane.xlu0 %73
    %v75 = vrcp.pop 16.0
    %v76 = vmul.f32 %v68, %v75
    %v77 = vmul.f32 %v71, %v75
    %v78 = vmul.f32 %v74, %v75
    %v79 = vsub.f32 %v59, %v76
    %v80 = vsub.f32 %v60, %v77
    %v81 = vsub.f32 %v61, %v78
    %v82 = vmul.f32 %v79, %v79
    %v83 = vmul.f32 %v80, %v80
    %v84 = vmul.f32 %v81, %v81
    %v85 = vsel %vm65, %v82, 0.0
    %86 = vadd.xlane.f32.xlu0 %v85
    %v87 = vpop.xlane.xlu0 %86
    %v88 = vsel %vm65, %v83, 0.0
    %89 = vadd.xlane.f32.xlu0 %v88
    %v90 = vpop.xlane.xlu0 %89
    %v91 = vsel %vm65, %v84, 0.0
    %92 = vadd.xlane.f32.xlu0 %v91
    %v93 = vpop.xlane.xlu0 %92
    %v94 = vmul.f32 %v87, %v75
    %v95 = vmul.f32 %v90, %v75
    %v96 = vmul.f32 %v93, %v75
    %v97 = vadd.f32 %v94, 1e-05
    %v98 = vadd.f32 %v95, 1e-05
    %v99 = vadd.f32 %v96, 1e-05
    %v100 = vrsqrt.pop %v97
    %v101 = vrsqrt.pop %v98
    %v102 = vrsqrt.pop %v99
    %v103 = vmul.f32 %v79, %v100
    %v104 = vmul.f32 %v80, %v101
    %v105 = vmul.f32 %v81, %v102
    %v106 = vpack.c.bf16 %v104, %v103
    %v107 = vpack.c.bf16 %v105, %v105
    %v108 = vld [vmem:[#allocation6] sm:$0xf]
    %v109 = vld [vmem:[#allocation6 + $0x4] sm:$0xf]
    %v110 = vld [vmem:[%s3] sm:$0x1]
    %v111 = vlaneseq
    %v112 = vshrl.u32 %v111, 7
    %v113 = vsub.s32 0, %v112
    %v114 = vrot.slane %v110, %v113
    %v117 = vunpack.c.l.b16 %v108
    %v118 = vunpack.c.l.b16 %v109
    %v119 = vpack.c.b16 %v118, %v117
    %v122 = vsel %vm65, %v106, 0
    %v125 = vsel %vm65, %v107, 0
    %127 = vmatprep.subr.bf16.mxu0 0
    %128 = vmatpush1.bf16.msra.mxu0 0
    %129 = vmatprep.subr.bf16.mxu0 0
    %130 = vmatpush1.bf16.msra.mxu0 0
    %131 = vmatprep.subr.bf16.mxu0 0
    %132 = vmatpush1.bf16.msra.mxu0 0
    %133 = vmatprep.subr.bf16.mxu0 0
    %134 = vmatpush1.bf16.msra.mxu0 0
    %135 = vmatprep.subr.bf16.mxu0 0
    %136 = vmatpush1.bf16.msra.mxu0 0
    %137 = vmatprep.subr.bf16.mxu0 0
    %138 = vmatpush1.bf16.msra.mxu0 0
    %139 = vmatprep.subr.bf16.mxu0 0
    %140 = vmatpush1.bf16.msra.mxu0 0
    %141 = vmatprep.subr.bf16.mxu0 0
    %142 = vmatpush1.bf16.msra.mxu0 %v119
    %143 = vmatprep.subr.bf16.mxu0 0
    %144 = vmatpush2.bf16.msra.mxu0 0
    %145 = vmatprep.subr.bf16.mxu0 0
    %146 = vmatpush2.bf16.msra.mxu0 0
    %147 = vmatprep.subr.bf16.mxu0 0
    %148 = vmatpush2.bf16.msra.mxu0 0
    %149 = vmatprep.subr.bf16.mxu0 0
    %150 = vmatpush2.bf16.msra.mxu0 0
    %151 = vmatprep.subr.bf16.mxu0 0
    %152 = vmatpush2.bf16.msra.mxu0 0
    %153 = vmatprep.subr.bf16.mxu0 0
    %154 = vmatpush2.bf16.msra.mxu0 0
    %155 = vmatprep.subr.bf16.mxu0 0
    %156 = vmatpush2.bf16.msra.mxu0 0
    %157 = vmatprep.subr.bf16.mxu0 0
    %158 = vmatpush2.bf16.msra.mxu0 0
    %159 = vmatprep.mubr.bf16.mxu0 0
    %160 = vmatmul.mubr.bf16.gmra.mxu0 %v122
    %v161 = vpop.f32.mrf.mxu0
    %v162 = vadd.f32 %v114, %v161
    %v163 = vpop.f32.mrf.mxu0
    %v164 = vpop.f32.mrf.mxu0
    %v165 = vadd.f32 %v114, %v164
    %v166 = vpop.f32.mrf.mxu0
    %167 = vmatprep.mubr.bf16.mxu0 0
    %168 = vmatmul.mubr.bf16.gmra.mxu0 %v125
    %v169 = vpop.f32.mrf.mxu0
    %v170 = vadd.f32 %v114, %v169
    %v171 = vpop.f32.mrf.mxu0
    %v172 = vpop.f32.mrf.mxu0
    %v173 = vpop.f32.mrf.mxu0
    %174 = vdwg.mxu0
    %vm175 = vcmask 261120
    %v176 = vsel %vm175, %v162, 0.0
    %177 = vadd.xlane.f32.xlu0 %v176
    %v178 = vpop.xlane.xlu0 %177
    %v179 = vsel %vm175, %v165, 0.0
    %180 = vadd.xlane.f32.xlu0 %v179
    %v181 = vpop.xlane.xlu0 %180
    %v182 = vsel %vm175, %v170, 0.0
    %183 = vadd.xlane.f32.xlu0 %v182
    %v184 = vpop.xlane.xlu0 %183
    %v185 = vrcp.pop 32.0
    %v186 = vmul.f32 %v178, %v185
    %v187 = vmul.f32 %v181, %v185
    %v188 = vmul.f32 %v184, %v185
    %v189 = vmul.f32 %v162, %v162
    %v190 = vmul.f32 %v165, %v165
    %v191 = vmul.f32 %v170, %v170
    %v192 = vsel %vm175, %v189, 0.0
    %193 = vadd.xlane.f32.xlu0 %v192
    %v194 = vpop.xlane.xlu0 %193
    %v195 = vsel %vm175, %v190, 0.0
    %196 = vadd.xlane.f32.xlu0 %v195
    %v197 = vpop.xlane.xlu0 %196
    %v198 = vsel %vm175, %v191, 0.0
    %199 = vadd.xlane.f32.xlu0 %v198
    %v200 = vpop.xlane.xlu0 %199
    %v201 = vmul.f32 %v194, %v185
    %v202 = vmul.f32 %v197, %v185
    %v203 = vmul.f32 %v200, %v185
    %v204 = vmul.f32 %v186, %v186
    %v205 = vmul.f32 %v187, %v187
    %v206 = vmul.f32 %v188, %v188
    %v207 = vsub.f32 %v201, %v204
    %v208 = vsub.f32 %v202, %v205
    %v209 = vsub.f32 %v203, %v206
    %v210 = vmax.f32 %v207, 0.0
    %v211 = vmax.f32 %v208, 0.0
    %v212 = vmax.f32 %v209, 0.0
    %v213 = vsub.f32 %v162, %v186
    %v214 = vsub.f32 %v165, %v187
    %v215 = vsub.f32 %v170, %v188
    %v216 = vadd.f32 %v210, 1e-05
    %v217 = vadd.f32 %v211, 1e-05
    %v218 = vadd.f32 %v212, 1e-05
    %v219 = vrsqrt.pop %v216
    %v220 = vrsqrt.pop %v217
    %v221 = vrsqrt.pop %v218
    %v222 = vmul.f32 %v213, %v219
    %v223 = vmul.f32 %v214, %v220
    %v224 = vmul.f32 %v215, %v221
    %v225 = vld [vmem:[%s3 + $0x1] sm:$0x1]
    %v226 = vlaneseq
    %v227 = vshrl.u32 %v226, 7
    %v228 = vsub.s32 0, %v227
    %v229 = vrot.slane %v225, %v228
    %v230 = vmul.f32 %v222, %v229
    %v231 = vmul.f32 %v223, %v229
    %v232 = vmul.f32 %v224, %v229
    %v233 = vld [vmem:[%s3 + $0x2] sm:$0x1]
    %v234 = vlaneseq
    %v235 = vshrl.u32 %v234, 7
    %v236 = vsub.s32 0, %v235
    %v237 = vrot.slane %v233, %v236
    %v238 = vadd.f32 %v230, %v237
    %v239 = vadd.f32 %v231, %v237
    %v240 = vadd.f32 %v232, %v237
    %v241 = vmax.f32 %v238, 0.0
    %v242 = vmax.f32 %v239, 0.0
    %v243 = vmax.f32 %v240, 0.0
    %v244 = vpack.c.bf16 %v242, %v241
    %v245 = vpack.c.bf16 %v243, %v243
    %v246 = vld [vmem:[#allocation6 + $0x8] sm:$0xf]
    %v247 = vld [vmem:[#allocation6 + $0xc] sm:$0xf]
    %v248 = vld [vmem:[#allocation6 + $0x10] sm:$0xf]
    %v249 = vld [vmem:[#allocation6 + $0x14] sm:$0xf]
    %v250 = vpack.c.bf16 %v63, %v62
    %v251 = vpack.c.bf16 %v64, %v64
    %v252 = vld [vmem:[#allocation6 + $0x18] sm:$0xf]
    %v253 = vld [vmem:[#allocation6 + $0x1c] sm:$0xf]
    %v254 = vld [vmem:[#allocation6 + $0x20] sm:$0xf]
    %v255 = vld [vmem:[#allocation6 + $0x24] sm:$0xf]
    %v260 = vunpack.c.l.b16 %v252
    %v261 = vunpack.c.l.b16 %v253
    %v262 = vunpack.c.l.b16 %v254
    %v263 = vunpack.c.l.b16 %v255
    %v264 = vpack.c.b16 %v261, %v260
    %v265 = vpack.c.b16 %v263, %v262
    %v269 = vsel %vm175, %v250, 0
    %v272 = vsel %vm175, %v251, 0
    %274 = vmatprep.subr.bf16.mxu0 0
    %275 = vmatpush1.bf16.msra.mxu0 0
    %276 = vmatprep.subr.bf16.mxu0 0
    %277 = vmatpush1.bf16.msra.mxu0 0
    %278 = vmatprep.subr.bf16.mxu0 0
    %279 = vmatpush1.bf16.msra.mxu0 0
    %280 = vmatprep.subr.bf16.mxu0 0
    %281 = vmatpush1.bf16.msra.mxu0 0
    %282 = vmatprep.subr.bf16.mxu0 0
    %283 = vmatpush1.bf16.msra.mxu0 0
    %284 = vmatprep.subr.bf16.mxu0 0
    %285 = vmatpush1.bf16.msra.mxu0 0
    %286 = vmatprep.subr.bf16.mxu0 0
    %287 = vmatpush1.bf16.msra.mxu0 %v265
    %288 = vmatprep.subr.bf16.mxu0 0
    %289 = vmatpush1.bf16.msra.mxu0 %v264
    %290 = vmatprep.subr.bf16.mxu0 0
    %291 = vmatpush2.bf16.msra.mxu0 0
    %292 = vmatprep.subr.bf16.mxu0 0
    %293 = vmatpush2.bf16.msra.mxu0 0
    %294 = vmatprep.subr.bf16.mxu0 0
    %295 = vmatpush2.bf16.msra.mxu0 0
    %296 = vmatprep.subr.bf16.mxu0 0
    %297 = vmatpush2.bf16.msra.mxu0 0
    %298 = vmatprep.subr.bf16.mxu0 0
    %299 = vmatpush2.bf16.msra.mxu0 0
    %300 = vmatprep.subr.bf16.mxu0 0
    %301 = vmatpush2.bf16.msra.mxu0 0
    %302 = vmatprep.subr.bf16.mxu0 0
    %303 = vmatpush2.bf16.msra.mxu0 0
    %304 = vmatprep.subr.bf16.mxu0 0
    %305 = vmatpush2.bf16.msra.mxu0 0
    %306 = vmatprep.mubr.bf16.mxu0 0
    %307 = vmatmul.mubr.bf16.gmra.mxu0 %v269
    %v308 = vpop.f32.mrf.mxu0
    %v309 = vadd.f32 0.0, %v308
    %v310 = vpop.f32.mrf.mxu0
    %v311 = vpop.f32.mrf.mxu0
    %v312 = vadd.f32 0.0, %v311
    %v313 = vpop.f32.mrf.mxu0
    %314 = vmatprep.mubr.bf16.mxu0 0
    %315 = vmatmul.mubr.bf16.gmra.mxu0 %v272
    %v316 = vpop.f32.mrf.mxu0
    %v317 = vadd.f32 0.0, %v316
    %v318 = vpop.f32.mrf.mxu0
    %v319 = vpop.f32.mrf.mxu0
    %v320 = vpop.f32.mrf.mxu0
    %321 = vdwg.mxu0
    %v326 = vunpack.c.l.b16 %v246
    %v327 = vunpack.c.l.b16 %v247
    %v328 = vunpack.c.l.b16 %v248
    %v329 = vunpack.c.l.b16 %v249
    %v330 = vpack.c.b16 %v327, %v326
    %v331 = vpack.c.b16 %v329, %v328
    %v335 = vsel %vm175, %v244, 0
    %v338 = vsel %vm175, %v245, 0
    %340 = vmatprep.subr.bf16.mxu0 0
    %341 = vmatpush1.bf16.msra.mxu0 0
    %342 = vmatprep.subr.bf16.mxu0 0
    %343 = vmatpush1.bf16.msra.mxu0 0
    %344 = vmatprep.subr.bf16.mxu0 0
    %345 = vmatpush1.bf16.msra.mxu0 0
    %346 = vmatprep.subr.bf16.mxu0 0
    %347 = vmatpush1.bf16.msra.mxu0 0
    %348 = vmatprep.subr.bf16.mxu0 0
    %349 = vmatpush1.bf16.msra.mxu0 0
    %350 = vmatprep.subr.bf16.mxu0 0
    %351 = vmatpush1.bf16.msra.mxu0 0
    %352 = vmatprep.subr.bf16.mxu0 0
    %353 = vmatpush1.bf16.msra.mxu0 %v331
    %354 = vmatprep.subr.bf16.mxu0 0
    %355 = vmatpush1.bf16.msra.mxu0 %v330
    %356 = vmatprep.subr.bf16.mxu0 0
    %357 = vmatpush2.bf16.msra.mxu0 0
    %358 = vmatprep.subr.bf16.mxu0 0
    %359 = vmatpush2.bf16.msra.mxu0 0
    %360 = vmatprep.subr.bf16.mxu0 0
    %361 = vmatpush2.bf16.msra.mxu0 0
    %362 = vmatprep.subr.bf16.mxu0 0
    %363 = vmatpush2.bf16.msra.mxu0 0
    %364 = vmatprep.subr.bf16.mxu0 0
    %365 = vmatpush2.bf16.msra.mxu0 0
    %366 = vmatprep.subr.bf16.mxu0 0
    %367 = vmatpush2.bf16.msra.mxu0 0
    %368 = vmatprep.subr.bf16.mxu0 0
    %369 = vmatpush2.bf16.msra.mxu0 0
    %370 = vmatprep.subr.bf16.mxu0 0
    %371 = vmatpush2.bf16.msra.mxu0 0
    %372 = vmatprep.mubr.bf16.mxu0 0
    %373 = vmatmul.mubr.bf16.gmra.mxu0 %v335
    %v374 = vpop.f32.mrf.mxu0
    %v375 = vadd.f32 %v309, %v374
    %v376 = vpop.f32.mrf.mxu0
    %v377 = vpop.f32.mrf.mxu0
    %v378 = vadd.f32 %v312, %v377
    %v379 = vpop.f32.mrf.mxu0
    %380 = vmatprep.mubr.bf16.mxu0 0
    %381 = vmatmul.mubr.bf16.gmra.mxu0 %v338
    %v382 = vpop.f32.mrf.mxu0
    %v383 = vadd.f32 %v317, %v382
    %v384 = vpop.f32.mrf.mxu0
    %v385 = vpop.f32.mrf.mxu0
    %v386 = vpop.f32.mrf.mxu0
    %387 = vdwg.mxu0
    %v388 = vld [vmem:[%s3 + $0x3] sm:$0x1]
    %v389 = vlaneseq
    %v390 = vshrl.u32 %v389, 7
    %v391 = vsub.s32 0, %v390
    %v392 = vrot.slane %v388, %v391
    %v393 = vadd.f32 %v375, %v392
    %v394 = vadd.f32 %v378, %v392
    %v395 = vadd.f32 %v383, %v392
    %v396 = vxor.u32 %v393, 2147483648
    %v397 = vxor.u32 %v394, 2147483648
    %v398 = vxor.u32 %v395, 2147483648
    %v399 = vmul.f32 %v396, 1.442695
    %v400 = vpow.pop %v399
    %v401 = vmul.f32 %v397, 1.442695
    %v402 = vpow.pop %v401
    %v403 = vmul.f32 %v398, 1.442695
    %v404 = vpow.pop %v403
    %v405 = vadd.f32 %v400, 1.0
    %v406 = vadd.f32 %v402, 1.0
    %v407 = vadd.f32 %v404, 1.0
    %v408 = vrcp.pop %v405
    %v409 = vmul.f32 1.0, %v408
    %v410 = vrcp.pop %v406
    %v411 = vmul.f32 1.0, %v410
    %v412 = vrcp.pop %v407
    %v413 = vmul.f32 1.0, %v412
    %417 = vrot.lane.b32.xlu0 %v393, 32
    %v418 = vpop.permute.xlu0 %417
    %419 = vrot.lane.b32.xlu0 %v394, 32
    %v420 = vpop.permute.xlu0 %419
    %421 = vrot.lane.b32.xlu0 %v395, 32
    %v422 = vpop.permute.xlu0 %421
    %v426 = vmul.f32 %v409, %v418
    %v427 = vmul.f32 %v411, %v420
    %v428 = vmul.f32 %v413, %v422
    %432 = vrot.lane.b32.xlu0 %v426, 64
    %v433 = vpop.permute.xlu0 %432
    %434 = vrot.lane.b32.xlu0 %v427, 64
    %v435 = vpop.permute.xlu0 %434
    %436 = vrot.lane.b32.xlu0 %v428, 64
    %v437 = vpop.permute.xlu0 %436
    %v441 = vadd.f32 %v393, %v433
    %v442 = vadd.f32 %v394, %v435
    %v443 = vadd.f32 %v395, %v437
    %v444 = vtanh.pop %v441
    %v445 = vtanh.pop %v442
    %v446 = vtanh.pop %v443
    %v447 = vsub.f32 1.0, %v409
    %v448 = vsub.f32 1.0, %v411
    %v449 = vsub.f32 1.0, %v413
    %453 = vrot.lane.b32.xlu0 %v444, 96
    %v454 = vpop.permute.xlu0 %453
    %455 = vrot.lane.b32.xlu0 %v445, 96
    %v456 = vpop.permute.xlu0 %455
    %457 = vrot.lane.b32.xlu0 %v446, 96
    %v458 = vpop.permute.xlu0 %457
    %v462 = vmul.f32 %v447, %v454
    %v463 = vmul.f32 %v448, %v456
    %v464 = vmul.f32 %v449, %v458
    %468 = vrot.lane.b32.xlu0 %v62, 32
    %v469 = vpop.permute.xlu0 %468
    %470 = vrot.lane.b32.xlu0 %v63, 32
    %v471 = vpop.permute.xlu0 %470
    %472 = vrot.lane.b32.xlu0 %v64, 32
    %v473 = vpop.permute.xlu0 %472
    %v477 = vmul.f32 %v409, %v469
    %v478 = vmul.f32 %v411, %v471
    %v479 = vmul.f32 %v413, %v473
    %v480 = vadd.f32 %v462, %v477
    %v481 = vadd.f32 %v463, %v478
    %v482 = vadd.f32 %v464, %v479
    %486 = vrot.lane.b32.xlu0 %v480, 96
    %v487 = vpop.permute.xlu0 %486
    %488 = vrot.lane.b32.xlu0 %v481, 96
    %v489 = vpop.permute.xlu0 %488
    %490 = vrot.lane.b32.xlu0 %v482, 96
    %v491 = vpop.permute.xlu0 %490
    %v495 = vsel %vm175, %v487, 0.0
    %496 = vadd.xlane.f32.xlu0 %v495
    %v497 = vpop.xlane.xlu0 %496
    %v498 = vsel %vm175, %v489, 0.0
    %499 = vadd.xlane.f32.xlu0 %v498
    %v500 = vpop.xlane.xlu0 %499
    %v501 = vsel %vm175, %v491, 0.0
    %502 = vadd.xlane.f32.xlu0 %v501
    %v503 = vpop.xlane.xlu0 %502
    %v504 = vmul.f32 %v497, %v185
    %v505 = vmul.f32 %v500, %v185
    %v506 = vmul.f32 %v503, %v185
    %v507 = vmul.f32 %v480, %v480
    %v508 = vmul.f32 %v481, %v481
    %v509 = vmul.f32 %v482, %v482
    %513 = vrot.lane.b32.xlu0 %v507, 96
    %v514 = vpop.permute.xlu0 %513
    %515 = vrot.lane.b32.xlu0 %v508, 96
    %v516 = vpop.permute.xlu0 %515
    %517 = vrot.lane.b32.xlu0 %v509, 96
    %v518 = vpop.permute.xlu0 %517
    %v522 = vsel %vm175, %v514, 0.0
    %523 = vadd.xlane.f32.xlu0 %v522
    %v524 = vpop.xlane.xlu0 %523
    %v525 = vsel %vm175, %v516, 0.0
    %526 = vadd.xlane.f32.xlu0 %v525
    %v527 = vpop.xlane.xlu0 %526
    %v528 = vsel %vm175, %v518, 0.0
    %529 = vadd.xlane.f32.xlu0 %v528
    %v530 = vpop.xlane.xlu0 %529
    %v531 = vmul.f32 %v524, %v185
    %v532 = vmul.f32 %v527, %v185
    %v533 = vmul.f32 %v530, %v185
    %v534 = vmul.f32 %v504, %v504
    %v535 = vmul.f32 %v505, %v505
    %v536 = vmul.f32 %v506, %v506
    %v537 = vsub.f32 %v531, %v534
    %v538 = vsub.f32 %v532, %v535
    %v539 = vsub.f32 %v533, %v536
    %v540 = vmax.f32 %v537, 0.0
    %v541 = vmax.f32 %v538, 0.0
    %v542 = vmax.f32 %v539, 0.0
    %v543 = vsub.f32 %v480, %v504
    %v544 = vsub.f32 %v481, %v505
    %v545 = vsub.f32 %v482, %v506
    %v546 = vadd.f32 %v540, 1e-05
    %v547 = vadd.f32 %v541, 1e-05
    %v548 = vadd.f32 %v542, 1e-05
    %v549 = vrsqrt.pop %v546
    %v550 = vrsqrt.pop %v547
    %v551 = vrsqrt.pop %v548
    %v552 = vmul.f32 %v543, %v549
    %v553 = vmul.f32 %v544, %v550
    %v554 = vmul.f32 %v545, %v551
    %v555 = vpack.c.bf16 %v553, %v552
    %v556 = vpack.c.bf16 %v554, %v554
    %v557 = vld [vmem:[#allocation6 + $0x28] sm:$0xf]
    %v558 = vld [vmem:[#allocation6 + $0x2c] sm:$0xf]
    %v559 = vld [vmem:[#allocation6 + $0x30] sm:$0xf]
    %v560 = vld [vmem:[#allocation6 + $0x34] sm:$0xf]
    %v561 = vld [vmem:[%s3 + $0x4] sm:$0x1]
    %v562 = vlaneseq
    %v563 = vshrl.u32 %v562, 7
    %v564 = vsub.s32 0, %v563
    %v565 = vrot.slane %v561, %v564
    %568 = vrot.lane.b32.xlu0 %v555, 96
    %v569 = vpop.permute.xlu0 %568
    %570 = vrot.lane.b32.xlu0 %v556, 96
    %v571 = vpop.permute.xlu0 %570
    %v576 = vunpack.c.l.b16 %v557
    %v577 = vunpack.c.l.b16 %v558
    %v578 = vunpack.c.l.b16 %v559
    %v579 = vunpack.c.l.b16 %v560
    %v580 = vpack.c.b16 %v577, %v576
    %v581 = vpack.c.b16 %v579, %v578
    %v585 = vsel %vm175, %v569, 0
    %v588 = vsel %vm175, %v571, 0
    %590 = vmatprep.subr.bf16.mxu0 0
    %591 = vmatpush1.bf16.msra.mxu0 0
    %592 = vmatprep.subr.bf16.mxu0 0
    %593 = vmatpush1.bf16.msra.mxu0 0
    %594 = vmatprep.subr.bf16.mxu0 0
    %595 = vmatpush1.bf16.msra.mxu0 0
    %596 = vmatprep.subr.bf16.mxu0 0
    %597 = vmatpush1.bf16.msra.mxu0 0
    %598 = vmatprep.subr.bf16.mxu0 0
    %599 = vmatpush1.bf16.msra.mxu0 0
    %600 = vmatprep.subr.bf16.mxu0 0
    %601 = vmatpush1.bf16.msra.mxu0 0
    %602 = vmatprep.subr.bf16.mxu0 0
    %603 = vmatpush1.bf16.msra.mxu0 %v581
    %604 = vmatprep.subr.bf16.mxu0 0
    %605 = vmatpush1.bf16.msra.mxu0 %v580
    %606 = vmatprep.subr.bf16.mxu0 0
    %607 = vmatpush2.bf16.msra.mxu0 0
    %608 = vmatprep.subr.bf16.mxu0 0
    %609 = vmatpush2.bf16.msra.mxu0 0
    %610 = vmatprep.subr.bf16.mxu0 0
    %611 = vmatpush2.bf16.msra.mxu0 0
    %612 = vmatprep.subr.bf16.mxu0 0
    %613 = vmatpush2.bf16.msra.mxu0 0
    %614 = vmatprep.subr.bf16.mxu0 0
    %615 = vmatpush2.bf16.msra.mxu0 0
    %616 = vmatprep.subr.bf16.mxu0 0
    %617 = vmatpush2.bf16.msra.mxu0 0
    %618 = vmatprep.subr.bf16.mxu0 0
    %619 = vmatpush2.bf16.msra.mxu0 0
    %620 = vmatprep.subr.bf16.mxu0 0
    %621 = vmatpush2.bf16.msra.mxu0 0
    %622 = vmatprep.mubr.bf16.mxu0 0
    %623 = vmatmul.mubr.bf16.gmra.mxu0 %v585
    %v624 = vpop.f32.mrf.mxu0
    %v625 = vadd.f32 %v565, %v624
    %v626 = vpop.f32.mrf.mxu0
    %v627 = vpop.f32.mrf.mxu0
    %v628 = vadd.f32 %v565, %v627
    %v629 = vpop.f32.mrf.mxu0
    %630 = vmatprep.mubr.bf16.mxu0 0
    %631 = vmatmul.mubr.bf16.gmra.mxu0 %v588
    %v632 = vpop.f32.mrf.mxu0
    %v633 = vadd.f32 %v565, %v632
    %v634 = vpop.f32.mrf.mxu0
    %v635 = vpop.f32.mrf.mxu0
    %v636 = vpop.f32.mrf.mxu0
    %637 = vdwg.mxu0
    %v638 = vsel %vm175, %v625, 0.0
    %639 = vadd.xlane.f32.xlu0 %v638
    %v640 = vpop.xlane.xlu0 %639
    %v641 = vsel %vm175, %v628, 0.0
    %642 = vadd.xlane.f32.xlu0 %v641
    %v643 = vpop.xlane.xlu0 %642
    %v644 = vsel %vm175, %v633, 0.0
    %645 = vadd.xlane.f32.xlu0 %v644
    %v646 = vpop.xlane.xlu0 %645
    %v647 = vmul.f32 %v640, %v185
    %v648 = vmul.f32 %v643, %v185
    %v649 = vmul.f32 %v646, %v185
    %v650 = vmul.f32 %v625, %v625
    %v651 = vmul.f32 %v628, %v628
    %v652 = vmul.f32 %v633, %v633
    %v653 = vsel %vm175, %v650, 0.0
    %654 = vadd.xlane.f32.xlu0 %v653
    %v655 = vpop.xlane.xlu0 %654
    %v656 = vsel %vm175, %v651, 0.0
    %657 = vadd.xlane.f32.xlu0 %v656
    %v658 = vpop.xlane.xlu0 %657
    %v659 = vsel %vm175, %v652, 0.0
    %660 = vadd.xlane.f32.xlu0 %v659
    %v661 = vpop.xlane.xlu0 %660
    %v662 = vmul.f32 %v655, %v185
    %v663 = vmul.f32 %v658, %v185
    %v664 = vmul.f32 %v661, %v185
    %v665 = vmul.f32 %v647, %v647
    %v666 = vmul.f32 %v648, %v648
    %v667 = vmul.f32 %v649, %v649
    %v668 = vsub.f32 %v662, %v665
    %v669 = vsub.f32 %v663, %v666
    %v670 = vsub.f32 %v664, %v667
    %v671 = vmax.f32 %v668, 0.0
    %v672 = vmax.f32 %v669, 0.0
    %v673 = vmax.f32 %v670, 0.0
    %v674 = vsub.f32 %v625, %v647
    %v675 = vsub.f32 %v628, %v648
    %v676 = vsub.f32 %v633, %v649
    %v677 = vadd.f32 %v671, 1e-05
    %v678 = vadd.f32 %v672, 1e-05
    %v679 = vadd.f32 %v673, 1e-05
    %v680 = vrsqrt.pop %v677
    %v681 = vrsqrt.pop %v678
    %v682 = vrsqrt.pop %v679
    %v683 = vmul.f32 %v674, %v680
    %v684 = vmul.f32 %v675, %v681
    %v685 = vmul.f32 %v676, %v682
    %v686 = vld [vmem:[%s3 + $0x5] sm:$0x1]
    %v687 = vlaneseq
    %v688 = vshrl.u32 %v687, 7
    %v689 = vsub.s32 0, %v688
    %v690 = vrot.slane %v686, %v689
    %v691 = vmul.f32 %v683, %v690
    %v692 = vmul.f32 %v684, %v690
    %v693 = vmul.f32 %v685, %v690
    %v694 = vld [vmem:[%s3 + $0x6] sm:$0x1]
    %v695 = vlaneseq
    %v696 = vshrl.u32 %v695, 7
    %v697 = vsub.s32 0, %v696
    %v698 = vrot.slane %v694, %v697
    %v699 = vadd.f32 %v691, %v698
    %v700 = vadd.f32 %v692, %v698
    %v701 = vadd.f32 %v693, %v698
    %v702 = vmax.f32 %v699, 0.0
    %v703 = vmax.f32 %v700, 0.0
    %v704 = vmax.f32 %v701, 0.0
    %v705 = vpack.c.bf16 %v703, %v702
    %v706 = vpack.c.bf16 %v704, %v704
    %v707 = vld [vmem:[#allocation6 + $0x38] sm:$0xf]
    %v708 = vld [vmem:[#allocation6 + $0x3c] sm:$0xf]
    %v709 = vld [vmem:[#allocation6 + $0x40] sm:$0xf]
    %v710 = vld [vmem:[#allocation6 + $0x44] sm:$0xf]
    %v711 = vld [vmem:[%s3 + $0x7] sm:$0x1]
    %v712 = vlaneseq
    %v713 = vshrl.u32 %v712, 7
    %v714 = vsub.s32 0, %v713
    %v715 = vrot.slane %v711, %v714
    %v720 = vunpack.c.l.b16 %v707
    %v721 = vunpack.c.l.b16 %v708
    %v722 = vunpack.c.l.b16 %v709
    %v723 = vunpack.c.l.b16 %v710
    %v724 = vpack.c.b16 %v721, %v720
    %v725 = vpack.c.b16 %v723, %v722
    %v729 = vsel %vm175, %v705, 0
    %v732 = vsel %vm175, %v706, 0
    %734 = vmatprep.subr.bf16.mxu0 0
    %735 = vmatpush1.bf16.msra.mxu0 0
    %736 = vmatprep.subr.bf16.mxu0 0
    %737 = vmatpush1.bf16.msra.mxu0 0
    %738 = vmatprep.subr.bf16.mxu0 0
    %739 = vmatpush1.bf16.msra.mxu0 0
    %740 = vmatprep.subr.bf16.mxu0 0
    %741 = vmatpush1.bf16.msra.mxu0 0
    %742 = vmatprep.subr.bf16.mxu0 0
    %743 = vmatpush1.bf16.msra.mxu0 0
    %744 = vmatprep.subr.bf16.mxu0 0
    %745 = vmatpush1.bf16.msra.mxu0 0
    %746 = vmatprep.subr.bf16.mxu0 0
    %747 = vmatpush1.bf16.msra.mxu0 %v725
    %748 = vmatprep.subr.bf16.mxu0 0
    %749 = vmatpush1.bf16.msra.mxu0 %v724
    %750 = vmatprep.subr.bf16.mxu0 0
    %751 = vmatpush2.bf16.msra.mxu0 0
    %752 = vmatprep.subr.bf16.mxu0 0
    %753 = vmatpush2.bf16.msra.mxu0 0
    %754 = vmatprep.subr.bf16.mxu0 0
    %755 = vmatpush2.bf16.msra.mxu0 0
    %756 = vmatprep.subr.bf16.mxu0 0
    %757 = vmatpush2.bf16.msra.mxu0 0
    %758 = vmatprep.subr.bf16.mxu0 0
    %759 = vmatpush2.bf16.msra.mxu0 0
    %760 = vmatprep.subr.bf16.mxu0 0
    %761 = vmatpush2.bf16.msra.mxu0 0
    %762 = vmatprep.subr.bf16.mxu0 0
    %763 = vmatpush2.bf16.msra.mxu0 0
    %764 = vmatprep.subr.bf16.mxu0 0
    %765 = vmatpush2.bf16.msra.mxu0 0
    %766 = vmatprep.mubr.bf16.mxu0 0
    %767 = vmatmul.mubr.bf16.gmra.mxu0 %v729
    %v768 = vpop.f32.mrf.mxu0
    %v769 = vadd.f32 %v715, %v768
    %v770 = vpop.f32.mrf.mxu0
    %v771 = vpop.f32.mrf.mxu0
    %v772 = vadd.f32 %v715, %v771
    %v773 = vpop.f32.mrf.mxu0
    %774 = vmatprep.mubr.bf16.mxu0 0
    %775 = vmatmul.mubr.bf16.gmra.mxu0 %v732
    %v776 = vpop.f32.mrf.mxu0
    %v777 = vadd.f32 %v715, %v776
    %v778 = vpop.f32.mrf.mxu0
    %v779 = vpop.f32.mrf.mxu0
    %v780 = vpop.f32.mrf.mxu0
    %781 = vdwg.mxu0
    %782 = vst [vmem:[%s4] sm:$0xff] %v769
    %783 = vst [vmem:[%s4 + $0x8] sm:$0xff] %v772
    %784 = vst [vmem:[%s4 + $0x10] sm:$0xff] %v777
    // Predicated region
    $region30: #{multi_agent_shared_forward.1} parent=1 // pred_check
      _
    $region31: #{multi_agent_shared_forward.1} parent=1 // pred_check_branch
      %786 = sbr.rel (0) target = $region33
    $region32: #{multi_agent_shared_forward.1} parent=1 // pred_region
      _
    $region33: #{multi_agent_shared_forward.1} parent=1 // pred_fallthru
      _
    // Predicated region
    $region34: #{multi_agent_shared_forward.1} parent=1 // pred_check
      _
    $region35: #{multi_agent_shared_forward.1} parent=1 // pred_check_branch
      %788 = sbr.rel (0) target = $region37
    $region36: #{multi_agent_shared_forward.1} parent=1 // pred_region
      _
    $region37: #{multi_agent_shared_forward.1} parent=1 // pred_fallthru
      _
    %789 = vsyncpa [#allocation3], 1
    %790 = vsyncpa [#allocation5], 1

</llo_original>
